<compile_context>
chip_gen: v5e
topology: v5e:2x2
jax: 0.10.0
libtpu: 0.0.40
codegen_flags: <defaults>
</compile_context>

<pallas_src>
import jax
import jax.numpy as jnp
from jax.experimental import pallas as pl
from jax.experimental.pallas import tpu as pltpu


def _round_up(x, m):
    return ((x + m - 1) // m) * m


def _cdiv(a, b):
    return -(-a // b)


def _vmem_capacity_bytes():
    # Trace-time hardware query; fall back to the smallest per-TC capacity (v7x).
    try:
        return int(pltpu.get_tpu_info().vmem_capacity_bytes)
    except Exception:
        return 64 * 1024 * 1024


def _linkpred_kernel(xh_ref, xr_ref, xt_ref,
                     w0h_ref, w0r_ref, w0t_ref, b0_ref,
                     w1_ref, b1_ref, w2_ref, b2_ref, o_ref):
    """One batch tile: three (tb, E) embedding tiles -> (1, tb) lane-dense probs."""
    cd = w1_ref.dtype  # compute dtype of the MXU operands (bf16 by default)

    # fc0: concat never materialized -> three partial matmuls, f32 accumulation.
    z0 = jnp.dot(xh_ref[...], w0h_ref[...], preferred_element_type=jnp.float32)
    z0 = z0 + jnp.dot(xr_ref[...], w0r_ref[...], preferred_element_type=jnp.float32)
    z0 = z0 + jnp.dot(xt_ref[...], w0t_ref[...], preferred_element_type=jnp.float32)
    h0 = jnp.maximum(z0 + b0_ref[...], 0.0).astype(cd)        # (tb, Hp) -> MXU dtype

    # fc1 + relu (f32 accumulation, bias in f32).
    h1 = jnp.maximum(
        jnp.dot(h0, w1_ref[...], preferred_element_type=jnp.float32) + b1_ref[...],
        0.0,
    ).astype(cd)

    # fc_out (H -> 1) as NT contraction (1,Hp) . (tb,Hp)^T -> (1,tb): lane-dense
    # result, no (tb,1) masked partial stores.  b2 is a scalar read from SMEM.
    z2 = jax.lax.dot_general(
        w2_ref[...], h1, (((1,), (1,)), ((), ())),
        preferred_element_type=jnp.float32,
    ) + b2_ref[0]
    o_ref[...] = jax.nn.sigmoid(z2)


def classic_link_pred_forward(h_head, h_relation, h_tail, params, *,
                              block_b=512, compute_dtype=jnp.bfloat16):
    """params: W0 (3E,H), b0 (H,), W1 (H,H), b1 (H,), W2 (H,1), b2 (1,).
    Weights stored already transposed: (in_features, out_features)."""
    B, E = h_head.shape
    H = params["W1"].shape[0]
    Hp = _round_up(H, 128)                      # pad hidden dim to full lane width
    cd = compute_dtype
    itemsize = jnp.dtype(cd).itemsize

    # ---- batch tile sizing: multiple of 128; >= 2 tiles when B allows so both
    # ---- v7x TensorCores get work (no-op on v5e/v6e).
    tb = min(int(block_b), _round_up(max(B, 1), 128))
    if B > 128 and _cdiv(B, tb) < 2:
        tb = max(128, _round_up(_cdiv(B, 2), 128))
    b_pad = _round_up(B, tb)
    num_tiles = b_pad // tb

    # ---- activations: cast to compute dtype, pad batch; no concat.
    def prep_x(a):
        a = a.astype(cd)
        if b_pad != B:
            a = jnp.pad(a, ((0, b_pad - B), (0, 0)))
        return a
    xh, xr, xt = prep_x(h_head), prep_x(h_relation), prep_x(h_tail)

    # ---- weights: split W0 into the three row-slices, pad hidden dim, cast.
    pad_h = Hp - H
    W0 = params["W0"]

    def prep_w(w):                              # (k, H) -> (k, Hp) in compute dtype
        if pad_h:
            w = jnp.pad(w, ((0, 0), (0, pad_h)))
        return w.astype(cd)

    w0h, w0r, w0t = prep_w(W0[:E]), prep_w(W0[E:2 * E]), prep_w(W0[2 * E:])
    w1 = params["W1"]
    if pad_h:
        w1 = jnp.pad(w1, ((0, pad_h), (0, pad_h)))
    w1 = w1.astype(cd)
    w2 = params["W2"].reshape(1, H)             # (H,1) -> row vector
    if pad_h:
        w2 = jnp.pad(w2, ((0, 0), (0, pad_h)))
    w2 = w2.astype(cd)

    # Biases stay f32 (added to f32 accumulators).  Padded lanes are zero.
    def prep_b(b):
        b = b.reshape(1, H).astype(jnp.float32)
        if pad_h:
            b = jnp.pad(b, ((0, 0), (0, pad_h)))
        return b
    b0, b1 = prep_b(params["b0"]), prep_b(params["b1"])
    b2 = params["b2"].reshape(1).astype(jnp.float32)          # SMEM scalar

    # ---- VMEM budget from actual shapes/dtypes (double-buffered by the pipeline).
    bytes_act = 3 * 2 * tb * E * itemsize                     # 3 streamed inputs
    bytes_w = 2 * (3 * E * Hp + Hp * Hp + 8 * Hp) * itemsize  # W0 slices, W1, W2 row
    bytes_bias = 2 * 2 * 8 * Hp * 4                           # b0,b1 pad to 8 sublanes
    bytes_out = 2 * 8 * tb * 4                                # (1, tb) f32 output
    bytes_live = 3 * tb * Hp * 4                              # h0/h1/acc live values
    vmem_need = bytes_act + bytes_w + bytes_bias + bytes_out + bytes_live
    vmem_cap = _vmem_capacity_bytes()
    vmem_limit = int(min(vmem_cap - 2 * 1024 * 1024,
                         max(32 * 1024 * 1024, vmem_need * 3 // 2 + 1024 * 1024)))

    # ---- advisory cost estimate from the actual streamed dtypes.
    flops = 2 * b_pad * (3 * E * Hp + Hp * Hp + Hp)
    bytes_accessed = (3 * b_pad * E * itemsize                # activations
                      + (3 * E * Hp + Hp * Hp + Hp) * itemsize  # weights
                      + (2 * Hp + 1) * 4                      # biases
                      + b_pad * 4)                            # output
    cost = pl.CostEstimate(flops=flops, transcendentals=b_pad,
                           bytes_accessed=bytes_accessed)

    resident = lambda shape: pl.BlockSpec(shape, lambda i: (0, 0))

    out = pl.pallas_call(
        _linkpred_kernel,
        out_shape=jax.ShapeDtypeStruct((1, b_pad), jnp.float32),
        grid=(num_tiles,),
        in_specs=[
            pl.BlockSpec((tb, E), lambda i: (i, 0)),   # h_head tile (streamed)
            pl.BlockSpec((tb, E), lambda i: (i, 0)),   # h_relation tile
            pl.BlockSpec((tb, E), lambda i: (i, 0)),   # h_tail tile
            resident((E, Hp)),                         # W0[:E]
            resident((E, Hp)),                         # W0[E:2E]
            resident((E, Hp)),                         # W0[2E:]
            resident((1, Hp)),                         # b0 (f32)
            resident((Hp, Hp)),                        # W1
            resident((1, Hp)),                         # b1 (f32)
            resident((1, Hp)),                         # W2 row
            pl.BlockSpec(memory_space=pltpu.MemorySpace.SMEM),  # b2 scalar
        ],
        out_specs=pl.BlockSpec((1, tb), lambda i: (0, i)),     # lane-dense output
        compiler_params=pltpu.CompilerParams(
            dimension_semantics=("parallel",),
            vmem_limit_bytes=vmem_limit,
        ),
        cost_estimate=cost,
    )(xh, xr, xt, w0h, w0r, w0t, b0, w1, b1, w2, b2)

    return out[0, :B]   # torch.flatten


def init_params(key, embedding_dim, hidden_dim):
    """Matches _init_weights: weights ~ N(0, 1), biases zero."""
    k0, k1, k2 = jax.random.split(key, 3)
    return {
        "W0": jax.random.normal(k0, (embedding_dim * 3, hidden_dim), jnp.float32),
        "b0": jnp.zeros((hidden_dim,), jnp.float32),
        "W1": jax.random.normal(k1, (hidden_dim, hidden_dim), jnp.float32),
        "b1": jnp.zeros((hidden_dim,), jnp.float32),
        "W2": jax.random.normal(k2, (hidden_dim, 1), jnp.float32),
        "b2": jnp.zeros((1,), jnp.float32),
    }


def _reference(h_head, h_rel, h_tail, params, compute_dtype):
    """Pure-JAX forward mirroring the kernel's dtype policy (f32 accumulation)."""
    cd = compute_dtype
    x = jnp.concatenate([h_head, h_rel, h_tail], axis=1).astype(cd)
    h0 = jax.nn.relu(jnp.dot(x, params["W0"].astype(cd),
                             preferred_element_type=jnp.float32) + params["b0"])
    h1 = jax.nn.relu(jnp.dot(h0.astype(cd), params["W1"].astype(cd),
                             preferred_element_type=jnp.float32) + params["b1"])
    z2 = jnp.dot(h1.astype(cd), params["W2"].astype(cd),
                 preferred_element_type=jnp.float32) + params["b2"]
    return jax.nn.sigmoid(z2).reshape(-1)


if __name__ == "__main__":
    B, E, H = 8, 16, 32
    key = jax.random.PRNGKey(0)
    kp, kh, kr, kt = jax.random.split(key, 4)

    params = init_params(kp, E, H)
    h_head = jax.random.normal(kh, (B, E), jnp.float32)
    h_rel = jax.random.normal(kr, (B, E), jnp.float32)
    h_tail = jax.random.normal(kt, (B, E), jnp.float32)

    # f32 path: tight check against the f32 reference.
    out_f32 = classic_link_pred_forward(h_head, h_rel, h_tail, params,
                                        compute_dtype=jnp.float32)
    jax.block_until_ready(out_f32)
    ref_f32 = _reference(h_head, h_rel, h_tail, params, jnp.float32)
    assert out_f32.shape == (B,)
    assert jnp.allclose(out_f32, ref_f32, atol=1e-4, rtol=1e-4), \
        float(jnp.max(jnp.abs(out_f32 - ref_f32)))

    # bf16 streaming path (default): check against the bf16-mirrored reference.
    out_bf16 = classic_link_pred_forward(h_head, h_rel, h_tail, params)
    jax.block_until_ready(out_bf16)
    ref_bf16 = _reference(h_head, h_rel, h_tail, params, jnp.bfloat16)
    assert out_bf16.shape == (B,)
    assert jnp.allclose(out_bf16, ref_bf16, atol=2e-3, rtol=2e-3), \
        float(jnp.max(jnp.abs(out_bf16 - ref_bf16)))

    print("KERNEL_OK")
</pallas_src>

<mosaic_0001>
module attributes {stable_mosaic.version = 11 : i64} {
  func.func @_linkpred_kernel(%arg0: i32, %arg1: memref<128x16xf32, #tpu.memory_space<vmem>>, %arg2: memref<128x16xf32, #tpu.memory_space<vmem>>, %arg3: memref<128x16xf32, #tpu.memory_space<vmem>>, %arg4: memref<16x128xf32, #tpu.memory_space<vmem>>, %arg5: memref<16x128xf32, #tpu.memory_space<vmem>>, %arg6: memref<16x128xf32, #tpu.memory_space<vmem>>, %arg7: memref<1x128xf32, #tpu.memory_space<vmem>>, %arg8: memref<128x128xf32, #tpu.memory_space<vmem>>, %arg9: memref<1x128xf32, #tpu.memory_space<vmem>>, %arg10: memref<1x128xf32, #tpu.memory_space<vmem>>, %arg11: memref<1xf32, #tpu.memory_space<smem>>, %arg12: memref<1x128xf32, #tpu.memory_space<vmem>>) attributes {dimension_semantics = [#tpu.dimension_semantics<parallel>], iteration_bounds = array<i64: 1>, scalar_prefetch = 0 : i64, scratch_operands = 0 : i64, tpu.core_type = #tpu.core_type<tc>, window_params = [{transform_indices = @transform_0, window_bounds = array<i64: 128, 16>}, {transform_indices = @transform_1, window_bounds = array<i64: 128, 16>}, {transform_indices = @transform_2, window_bounds = array<i64: 128, 16>}, {pipeline_mode = #tpu.pipeline_mode<synchronous>, transform_indices = @transform_3, window_bounds = array<i64: 16, 128>}, {pipeline_mode = #tpu.pipeline_mode<synchronous>, transform_indices = @transform_4, window_bounds = array<i64: 16, 128>}, {pipeline_mode = #tpu.pipeline_mode<synchronous>, transform_indices = @transform_5, window_bounds = array<i64: 16, 128>}, {pipeline_mode = #tpu.pipeline_mode<synchronous>, transform_indices = @transform_6, window_bounds = array<i64: 1, 128>}, {pipeline_mode = #tpu.pipeline_mode<synchronous>, transform_indices = @transform_7, window_bounds = array<i64: 128, 128>}, {pipeline_mode = #tpu.pipeline_mode<synchronous>, transform_indices = @transform_8, window_bounds = array<i64: 1, 128>}, {pipeline_mode = #tpu.pipeline_mode<synchronous>, transform_indices = @transform_9, window_bounds = array<i64: 1, 128>}, {transform_indices = @transform_10, window_bounds = array<i64: 1>}, {transform_indices = @transform_11, window_bounds = array<i64: 1, 128>}]} {
    %c0 = arith.constant 0 : index
    %c0_0 = arith.constant 0 : index
    %0 = vector.load %arg1[%c0, %c0_0] : memref<128x16xf32, #tpu.memory_space<vmem>>, vector<128x16xf32>
    %c0_1 = arith.constant 0 : index
    %c0_2 = arith.constant 0 : index
    %1 = vector.load %arg4[%c0_1, %c0_2] : memref<16x128xf32, #tpu.memory_space<vmem>>, vector<16x128xf32>
    %cst = arith.constant dense<0.000000e+00> : vector<128x128xf32>
    %2 = tpu.matmul %0, %1, %cst {dimension_numbers = #tpu.dot_dimension_numbers<[1], [0], [0], [1], [0, 0, 1, 1], [], []>} : vector<128x16xf32>, vector<16x128xf32>, vector<128x128xf32> -> vector<128x128xf32>
    %c0_3 = arith.constant 0 : index
    %c0_4 = arith.constant 0 : index
    %3 = vector.load %arg2[%c0_3, %c0_4] : memref<128x16xf32, #tpu.memory_space<vmem>>, vector<128x16xf32>
    %c0_5 = arith.constant 0 : index
    %c0_6 = arith.constant 0 : index
    %4 = vector.load %arg5[%c0_5, %c0_6] : memref<16x128xf32, #tpu.memory_space<vmem>>, vector<16x128xf32>
    %cst_7 = arith.constant dense<0.000000e+00> : vector<128x128xf32>
    %5 = tpu.matmul %3, %4, %cst_7 {dimension_numbers = #tpu.dot_dimension_numbers<[1], [0], [0], [1], [0, 0, 1, 1], [], []>} : vector<128x16xf32>, vector<16x128xf32>, vector<128x128xf32> -> vector<128x128xf32>
    %6 = arith.addf %2, %5 : vector<128x128xf32>
    %c0_8 = arith.constant 0 : index
    %c0_9 = arith.constant 0 : index
    %7 = vector.load %arg3[%c0_8, %c0_9] : memref<128x16xf32, #tpu.memory_space<vmem>>, vector<128x16xf32>
    %c0_10 = arith.constant 0 : index
    %c0_11 = arith.constant 0 : index
    %8 = vector.load %arg6[%c0_10, %c0_11] : memref<16x128xf32, #tpu.memory_space<vmem>>, vector<16x128xf32>
    %cst_12 = arith.constant dense<0.000000e+00> : vector<128x128xf32>
    %9 = tpu.matmul %7, %8, %cst_12 {dimension_numbers = #tpu.dot_dimension_numbers<[1], [0], [0], [1], [0, 0, 1, 1], [], []>} : vector<128x16xf32>, vector<16x128xf32>, vector<128x128xf32> -> vector<128x128xf32>
    %10 = arith.addf %6, %9 : vector<128x128xf32>
    %c0_13 = arith.constant 0 : index
    %c0_14 = arith.constant 0 : index
    %11 = vector.load %arg7[%c0_13, %c0_14] : memref<1x128xf32, #tpu.memory_space<vmem>>, vector<1x128xf32>
    %12 = vector.broadcast %11 : vector<1x128xf32> to vector<128x128xf32>
    %13 = arith.addf %10, %12 : vector<128x128xf32>
    %cst_15 = arith.constant 0.000000e+00 : f32
    %14 = vector.broadcast %cst_15 : f32 to vector<128x128xf32>
    %15 = arith.maximumf %13, %14 : vector<128x128xf32>
    %c0_16 = arith.constant 0 : index
    %c0_17 = arith.constant 0 : index
    %16 = vector.load %arg8[%c0_16, %c0_17] : memref<128x128xf32, #tpu.memory_space<vmem>>, vector<128x128xf32>
    %cst_18 = arith.constant dense<0.000000e+00> : vector<128x128xf32>
    %17 = tpu.matmul %15, %16, %cst_18 {dimension_numbers = #tpu.dot_dimension_numbers<[1], [0], [0], [1], [0, 0, 1, 1], [], []>} : vector<128x128xf32>, vector<128x128xf32>, vector<128x128xf32> -> vector<128x128xf32>
    %c0_19 = arith.constant 0 : index
    %c0_20 = arith.constant 0 : index
    %18 = vector.load %arg9[%c0_19, %c0_20] : memref<1x128xf32, #tpu.memory_space<vmem>>, vector<1x128xf32>
    %19 = vector.broadcast %18 : vector<1x128xf32> to vector<128x128xf32>
    %20 = arith.addf %17, %19 : vector<128x128xf32>
    %cst_21 = arith.constant 0.000000e+00 : f32
    %21 = vector.broadcast %cst_21 : f32 to vector<128x128xf32>
    %22 = arith.maximumf %20, %21 : vector<128x128xf32>
    %c0_22 = arith.constant 0 : index
    %c0_23 = arith.constant 0 : index
    %23 = vector.load %arg10[%c0_22, %c0_23] : memref<1x128xf32, #tpu.memory_space<vmem>>, vector<1x128xf32>
    %cst_24 = arith.constant dense<0.000000e+00> : vector<1x128xf32>
    %24 = tpu.matmul %23, %22, %cst_24 {dimension_numbers = #tpu.dot_dimension_numbers<[1], [1], [0], [0], [0, 0, 1, 0], [], []>} : vector<1x128xf32>, vector<128x128xf32>, vector<1x128xf32> -> vector<1x128xf32>
    %c0_25 = arith.constant 0 : index
    %25 = memref.load %arg11[%c0_25] : memref<1xf32, #tpu.memory_space<smem>>
    %26 = vector.broadcast %25 : f32 to vector<1x128xf32>
    %27 = arith.addf %24, %26 : vector<1x128xf32>
    %28 = arith.negf %27 : vector<1x128xf32>
    %29 = math.exp %28 : vector<1x128xf32>
    %cst_26 = arith.constant 1.000000e+00 : f32
    %30 = vector.broadcast %cst_26 : f32 to vector<1x128xf32>
    %31 = arith.addf %30, %29 : vector<1x128xf32>
    %32 = arith.divf %30, %31 : vector<1x128xf32>
    %c0_27 = arith.constant 0 : index
    %c0_28 = arith.constant 0 : index
    %33 = vector.load %arg12[%c0_27, %c0_28] : memref<1x128xf32, #tpu.memory_space<vmem>>, vector<1x128xf32>
    tpu.vector_store %arg12[%c0_27, %c0_28], %32 {strides = array<i32>} : memref<1x128xf32, #tpu.memory_space<vmem>>, vector<1x128xf32>,
    return
  }
  func.func @transform_0(%arg0: i32) -> (i32, i32) {
    %c0_i32 = arith.constant 0 : i32
    %c0_i32_0 = arith.constant 0 : i32
    return %arg0, %c0_i32 : i32, i32
  }
  func.func @transform_1(%arg0: i32) -> (i32, i32) {
    %c0_i32 = arith.constant 0 : i32
    %c0_i32_0 = arith.constant 0 : i32
    return %arg0, %c0_i32 : i32, i32
  }
  func.func @transform_2(%arg0: i32) -> (i32, i32) {
    %c0_i32 = arith.constant 0 : i32
    %c0_i32_0 = arith.constant 0 : i32
    return %arg0, %c0_i32 : i32, i32
  }
  func.func @transform_3(%arg0: i32) -> (i32, i32) {
    %c0_i32 = arith.constant 0 : i32
    %c0_i32_0 = arith.constant 0 : i32
    %c0_i32_1 = arith.constant 0 : i32
    return %c0_i32, %c0_i32_0 : i32, i32
  }
  func.func @transform_4(%arg0: i32) -> (i32, i32) {
    %c0_i32 = arith.constant 0 : i32
    %c0_i32_0 = arith.constant 0 : i32
    %c0_i32_1 = arith.constant 0 : i32
    return %c0_i32, %c0_i32_0 : i32, i32
  }
  func.func @transform_5(%arg0: i32) -> (i32, i32) {
    %c0_i32 = arith.constant 0 : i32
    %c0_i32_0 = arith.constant 0 : i32
    %c0_i32_1 = arith.constant 0 : i32
    return %c0_i32, %c0_i32_0 : i32, i32
  }
  func.func @transform_6(%arg0: i32) -> (i32, i32) {
    %c0_i32 = arith.constant 0 : i32
    %c0_i32_0 = arith.constant 0 : i32
    %c0_i32_1 = arith.constant 0 : i32
    return %c0_i32, %c0_i32_0 : i32, i32
  }
  func.func @transform_7(%arg0: i32) -> (i32, i32) {
    %c0_i32 = arith.constant 0 : i32
    %c0_i32_0 = arith.constant 0 : i32
    %c0_i32_1 = arith.constant 0 : i32
    return %c0_i32, %c0_i32_0 : i32, i32
  }
  func.func @transform_8(%arg0: i32) -> (i32, i32) {
    %c0_i32 = arith.constant 0 : i32
    %c0_i32_0 = arith.constant 0 : i32
    %c0_i32_1 = arith.constant 0 : i32
    return %c0_i32, %c0_i32_0 : i32, i32
  }
  func.func @transform_9(%arg0: i32) -> (i32, i32) {
    %c0_i32 = arith.constant 0 : i32
    %c0_i32_0 = arith.constant 0 : i32
    %c0_i32_1 = arith.constant 0 : i32
    return %c0_i32, %c0_i32_0 : i32, i32
  }
  func.func @transform_10(%arg0: i32) -> i32 {
    %c0_i32 = arith.constant 0 : i32
    %c0_i32_0 = arith.constant 0 : i32
    return %c0_i32 : i32
  }
  func.func @transform_11(%arg0: i32) -> (i32, i32) {
    %c0_i32 = arith.constant 0 : i32
    %c0_i32_0 = arith.constant 0 : i32
    return %c0_i32, %arg0 : i32, i32
  }
}

</mosaic_0001>

<llo_original>
// kernel: tpu_custom_call.1
$region0: #{tpu_custom_call.1}
  #allocation0 [shape = 'u32[]', space=smem, size = 0x4, offset = 0x4, fixed_abs, tag = 'smem constant byte address 0x4 - core index']
  #allocation1 [shape = 'u32[72,128]{1,0:T(1,128)}', space=vmem, size = 0x9000, scoped, tag = 'internal scratch']
  #allocation2 [shape = 'f32[1]{0:T(128)S(6)}', space=smem, size = 0x200, scoped, tag = 'scoped memory for tpu_custom_call.1']
  %s0 = inlined_call_operand.vmem [shape: f32[128,16], index: 0, kind: input, shape index: {}]
  %s1 = inlined_call_operand.vmem [shape: f32[128,16], index: 1, kind: input, shape index: {}]
  %s2 = inlined_call_operand.vmem [shape: f32[128,16], index: 2, kind: input, shape index: {}]
  %s3 = inlined_call_operand.vmem [shape: f32[16,128], index: 3, kind: input, shape index: {}]
  %s4 = inlined_call_operand.vmem [shape: f32[16,128], index: 4, kind: input, shape index: {}]
  %s5 = inlined_call_operand.vmem [shape: f32[16,128], index: 5, kind: input, shape index: {}]
  %s6 = inlined_call_operand.vmem [shape: f32[1,128], index: 6, kind: input, shape index: {}]
  %s7 = inlined_call_operand.vmem [shape: f32[128,128], index: 7, kind: input, shape index: {}]
  %s8 = inlined_call_operand.vmem [shape: f32[1,128], index: 8, kind: input, shape index: {}]
  %s9 = inlined_call_operand.vmem [shape: f32[1,128], index: 9, kind: input, shape index: {}]
  %s10 = inlined_call_operand.<no memory space> [shape: f32[1], index: 10, kind: input, shape index: {}]
  %s11 = inlined_call_operand.hbm [shape: f32[1,128], index: 11, kind: output, shape index: {}]
  %s12 = sld [smem:[#allocation0]]
  $region54: #{tpu_custom_call.1} parent=0
    _
  %s14 = ssub.s32 1, %s12
  %s15 = scalar_select 0, %s14, %s12
  %16 = sst [smem:[#allocation2]] %s10
  $region1: #{tpu_custom_call.1} parent=0
    #allocation3 [shape = 'u8[512]{0}', space=vmem, size = 0x400, scoped, tag = 'output window, operand 0, single buffered']
    #allocation4 [shape = 's32[1]{0}', space=sflag, size = 0x4, scoped, tag = 'scoped memory for tpu_custom_call.1']
    %17 = vsyncpa [#allocation4], 0
    // Predicated region
    $region2: #{tpu_custom_call.1} parent=1 // pred_check
      _
    $region3: #{tpu_custom_call.1} parent=1 // pred_check_branch
      %19 = sbr.rel (0) target = $region5
    $region4: #{tpu_custom_call.1} parent=1 // pred_region
      _
    $region5: #{tpu_custom_call.1} parent=1 // pred_fallthru
      _
    // Predicated region
    $region6: #{tpu_custom_call.1} parent=1 // pred_check
      _
    $region7: #{tpu_custom_call.1} parent=1 // pred_check_branch
      %21 = sbr.rel (0) target = $region9
    $region8: #{tpu_custom_call.1} parent=1 // pred_region
      _
    $region9: #{tpu_custom_call.1} parent=1 // pred_fallthru
      _
    // Predicated region
    $region10: #{tpu_custom_call.1} parent=1 // pred_check
      _
    $region11: #{tpu_custom_call.1} parent=1 // pred_check_branch
      %23 = sbr.rel (0) target = $region13
    $region12: #{tpu_custom_call.1} parent=1 // pred_region
      _
    $region13: #{tpu_custom_call.1} parent=1 // pred_fallthru
      _
    // Predicated region
    $region14: #{tpu_custom_call.1} parent=1 // pred_check
      _
    $region15: #{tpu_custom_call.1} parent=1 // pred_check_branch
      %25 = sbr.rel (0) target = $region17
    $region16: #{tpu_custom_call.1} parent=1 // pred_region
      _
    $region17: #{tpu_custom_call.1} parent=1 // pred_fallthru
      _
    // Predicated region
    $region18: #{tpu_custom_call.1} parent=1 // pred_check
      _
    $region19: #{tpu_custom_call.1} parent=1 // pred_check_branch
      %27 = sbr.rel (0) target = $region21
    $region20: #{tpu_custom_call.1} parent=1 // pred_region
      _
    $region21: #{tpu_custom_call.1} parent=1 // pred_fallthru
      _
    // Predicated region
    $region22: #{tpu_custom_call.1} parent=1 // pred_check
      _
    $region23: #{tpu_custom_call.1} parent=1 // pred_check_branch
      %29 = sbr.rel (0) target = $region25
    $region24: #{tpu_custom_call.1} parent=1 // pred_region
      _
    $region25: #{tpu_custom_call.1} parent=1 // pred_fallthru
      _
    // Predicated region
    $region26: #{tpu_custom_call.1} parent=1 // pred_check
      _
    $region27: #{tpu_custom_call.1} parent=1 // pred_check_branch
      %31 = sbr.rel (0) target = $region29
    $region28: #{tpu_custom_call.1} parent=1 // pred_region
      _
    $region29: #{tpu_custom_call.1} parent=1 // pred_fallthru
      _
    // Predicated region
    $region30: #{tpu_custom_call.1} parent=1 // pred_check
      _
    $region31: #{tpu_custom_call.1} parent=1 // pred_check_branch
      %33 = sbr.rel (0) target = $region33
    $region32: #{tpu_custom_call.1} parent=1 // pred_region
      _
    $region33: #{tpu_custom_call.1} parent=1 // pred_fallthru
      _
    // Predicated region
    $region34: #{tpu_custom_call.1} parent=1 // pred_check
      _
    $region35: #{tpu_custom_call.1} parent=1 // pred_check_branch
      %35 = sbr.rel (0) target = $region37
    $region36: #{tpu_custom_call.1} parent=1 // pred_region
      _
    $region37: #{tpu_custom_call.1} parent=1 // pred_fallthru
      _
    // Predicated region
    $region38: #{tpu_custom_call.1} parent=1 // pred_check
      _
    $region39: #{tpu_custom_call.1} parent=1 // pred_check_branch
      %37 = sbr.rel (0) target = $region41
    $region40: #{tpu_custom_call.1} parent=1 // pred_region
      _
    $region41: #{tpu_custom_call.1} parent=1 // pred_fallthru
      _
    // Predicated region
    $region42: #{tpu_custom_call.1} parent=1 // pred_check
      _
    $region43: #{tpu_custom_call.1} parent=1 // pred_check_branch
      %39 = sbr.rel (0) target = $region45
    $region44: #{tpu_custom_call.1} parent=1 // pred_region
      _
    $region45: #{tpu_custom_call.1} parent=1 // pred_fallthru
      _
    %v40 = vld [vmem:[%s0] sm:$0xff]
    %v41 = vld [vmem:[%s0 + $0x8] sm:$0xff]
    %v42 = vld [vmem:[%s0 + $0x10] sm:$0xff]
    %v43 = vld [vmem:[%s0 + $0x18] sm:$0xff]
    %v44 = vld [vmem:[%s0 + $0x20] sm:$0xff]
    %v45 = vld [vmem:[%s0 + $0x28] sm:$0xff]
    %v46 = vld [vmem:[%s0 + $0x30] sm:$0xff]
    %v47 = vld [vmem:[%s0 + $0x38] sm:$0xff]
    %v48 = vld [vmem:[%s0 + $0x40] sm:$0xff]
    %v49 = vld [vmem:[%s0 + $0x48] sm:$0xff]
    %v50 = vld [vmem:[%s0 + $0x50] sm:$0xff]
    %v51 = vld [vmem:[%s0 + $0x58] sm:$0xff]
    %v52 = vld [vmem:[%s0 + $0x60] sm:$0xff]
    %v53 = vld [vmem:[%s0 + $0x68] sm:$0xff]
    %v54 = vld [vmem:[%s0 + $0x70] sm:$0xff]
    %v55 = vld [vmem:[%s0 + $0x78] sm:$0xff]
    %v56 = vld [vmem:[%s3] sm:$0xff]
    %v57 = vld [vmem:[%s3 + $0x8] sm:$0xff]
    %v58 = vld [vmem:[%s1] sm:$0xff]
    %v59 = vld [vmem:[%s1 + $0x8] sm:$0xff]
    %v60 = vld [vmem:[%s1 + $0x10] sm:$0xff]
    %v61 = vld [vmem:[%s1 + $0x18] sm:$0xff]
    %v62 = vld [vmem:[%s1 + $0x20] sm:$0xff]
    %v63 = vld [vmem:[%s1 + $0x28] sm:$0xff]
    %v64 = vld [vmem:[%s1 + $0x30] sm:$0xff]
    %v65 = vld [vmem:[%s1 + $0x38] sm:$0xff]
    %v66 = vld [vmem:[%s1 + $0x40] sm:$0xff]
    %v67 = vld [vmem:[%s1 + $0x48] sm:$0xff]
    %v68 = vld [vmem:[%s1 + $0x50] sm:$0xff]
    %v69 = vld [vmem:[%s1 + $0x58] sm:$0xff]
    %v70 = vld [vmem:[%s1 + $0x60] sm:$0xff]
    %v71 = vld [vmem:[%s1 + $0x68] sm:$0xff]
    %v72 = vld [vmem:[%s1 + $0x70] sm:$0xff]
    %v73 = vld [vmem:[%s1 + $0x78] sm:$0xff]
    %v74 = vld [vmem:[%s4] sm:$0xff]
    %v75 = vld [vmem:[%s4 + $0x8] sm:$0xff]
    %vm76 = vcmask 130048
    %v78 = vsel %vm76, %v58, 0
    %v81 = vsel %vm76, %v59, 0
    %v84 = vsel %vm76, %v60, 0
    %v87 = vsel %vm76, %v61, 0
    %v90 = vsel %vm76, %v62, 0
    %v93 = vsel %vm76, %v63, 0
    %v96 = vsel %vm76, %v64, 0
    %v99 = vsel %vm76, %v65, 0
    %v102 = vsel %vm76, %v66, 0
    %v105 = vsel %vm76, %v67, 0
    %v108 = vsel %vm76, %v68, 0
    %v111 = vsel %vm76, %v69, 0
    %v114 = vsel %vm76, %v70, 0
    %v117 = vsel %vm76, %v71, 0
    %v120 = vsel %vm76, %v72, 0
    %v123 = vsel %vm76, %v73, 0
    %125 = vmatpush.msra.mxu0 0.0
    %126 = vmatpush.msra.mxu0 0.0
    %127 = vmatpush.msra.mxu0 0.0
    %128 = vmatpush.msra.mxu0 0.0
    %129 = vmatpush.msra.mxu0 0.0
    %130 = vmatpush.msra.mxu0 0.0
    %131 = vmatpush.msra.mxu0 0.0
    %132 = vmatpush.msra.mxu0 0.0
    %133 = vmatpush.msra.mxu0 0.0
    %134 = vmatpush.msra.mxu0 0.0
    %135 = vmatpush.msra.mxu0 0.0
    %136 = vmatpush.msra.mxu0 0.0
    %137 = vmatpush.msra.mxu0 0.0
    %138 = vmatpush.msra.mxu0 0.0
    %139 = vmatpush.msra.mxu0 %v75
    %140 = vmatpush.msra.mxu0 %v74
    %141 = vmatmul.f32.gmra.mxu0 %v78
    %v142 = vpop.f32.mrf.mxu0
    %v143 = vadd.f32 0.0, %v142
    %144 = vmatmul.f32.gmra.mxu0 %v81
    %v145 = vpop.f32.mrf.mxu0
    %v146 = vadd.f32 0.0, %v145
    %147 = vmatmul.f32.gmra.mxu0 %v84
    %v148 = vpop.f32.mrf.mxu0
    %v149 = vadd.f32 0.0, %v148
    %150 = vmatmul.f32.gmra.mxu0 %v87
    %v151 = vpop.f32.mrf.mxu0
    %v152 = vadd.f32 0.0, %v151
    %153 = vmatmul.f32.gmra.mxu0 %v90
    %v154 = vpop.f32.mrf.mxu0
    %v155 = vadd.f32 0.0, %v154
    %156 = vmatmul.f32.gmra.mxu0 %v93
    %v157 = vpop.f32.mrf.mxu0
    %v158 = vadd.f32 0.0, %v157
    %159 = vmatmul.f32.gmra.mxu0 %v96
    %v160 = vpop.f32.mrf.mxu0
    %v161 = vadd.f32 0.0, %v160
    %162 = vmatmul.f32.gmra.mxu0 %v99
    %v163 = vpop.f32.mrf.mxu0
    %v164 = vadd.f32 0.0, %v163
    %165 = vmatmul.f32.gmra.mxu0 %v102
    %v166 = vpop.f32.mrf.mxu0
    %v167 = vadd.f32 0.0, %v166
    %168 = vmatmul.f32.gmra.mxu0 %v105
    %v169 = vpop.f32.mrf.mxu0
    %v170 = vadd.f32 0.0, %v169
    %171 = vmatmul.f32.gmra.mxu0 %v108
    %v172 = vpop.f32.mrf.mxu0
    %v173 = vadd.f32 0.0, %v172
    %174 = vmatmul.f32.gmra.mxu0 %v111
    %v175 = vpop.f32.mrf.mxu0
    %v176 = vadd.f32 0.0, %v175
    %177 = vmatmul.f32.gmra.mxu0 %v114
    %v178 = vpop.f32.mrf.mxu0
    %v179 = vadd.f32 0.0, %v178
    %180 = vmatmul.f32.gmra.mxu0 %v117
    %v181 = vpop.f32.mrf.mxu0
    %v182 = vadd.f32 0.0, %v181
    %183 = vmatmul.f32.gmra.mxu0 %v120
    %v184 = vpop.f32.mrf.mxu0
    %v185 = vadd.f32 0.0, %v184
    %186 = vmatmul.f32.gmra.mxu0 %v123
    %v187 = vpop.f32.mrf.mxu0
    %v188 = vadd.f32 0.0, %v187
    %189 = vdwg.mxu0
    %v191 = vsel %vm76, %v40, 0
    %v194 = vsel %vm76, %v41, 0
    %v197 = vsel %vm76, %v42, 0
    %v200 = vsel %vm76, %v43, 0
    %v203 = vsel %vm76, %v44, 0
    %v206 = vsel %vm76, %v45, 0
    %v209 = vsel %vm76, %v46, 0
    %v212 = vsel %vm76, %v47, 0
    %v215 = vsel %vm76, %v48, 0
    %v218 = vsel %vm76, %v49, 0
    %v221 = vsel %vm76, %v50, 0
    %v224 = vsel %vm76, %v51, 0
    %v227 = vsel %vm76, %v52, 0
    %v230 = vsel %vm76, %v53, 0
    %v233 = vsel %vm76, %v54, 0
    %v236 = vsel %vm76, %v55, 0
    %238 = vmatpush.msra.mxu0 0.0
    %239 = vmatpush.msra.mxu0 0.0
    %240 = vmatpush.msra.mxu0 0.0
    %241 = vmatpush.msra.mxu0 0.0
    %242 = vmatpush.msra.mxu0 0.0
    %243 = vmatpush.msra.mxu0 0.0
    %244 = vmatpush.msra.mxu0 0.0
    %245 = vmatpush.msra.mxu0 0.0
    %246 = vmatpush.msra.mxu0 0.0
    %247 = vmatpush.msra.mxu0 0.0
    %248 = vmatpush.msra.mxu0 0.0
    %249 = vmatpush.msra.mxu0 0.0
    %250 = vmatpush.msra.mxu0 0.0
    %251 = vmatpush.msra.mxu0 0.0
    %252 = vmatpush.msra.mxu0 %v57
    %253 = vmatpush.msra.mxu0 %v56
    %254 = vmatmul.f32.gmra.mxu0 %v191
    %v255 = vpop.f32.mrf.mxu0
    %v256 = vadd.f32 %v143, %v255
    %257 = vmatmul.f32.gmra.mxu0 %v194
    %v258 = vpop.f32.mrf.mxu0
    %v259 = vadd.f32 %v146, %v258
    %260 = vmatmul.f32.gmra.mxu0 %v197
    %v261 = vpop.f32.mrf.mxu0
    %v262 = vadd.f32 %v149, %v261
    %263 = vmatmul.f32.gmra.mxu0 %v200
    %v264 = vpop.f32.mrf.mxu0
    %v265 = vadd.f32 %v152, %v264
    %266 = vmatmul.f32.gmra.mxu0 %v203
    %v267 = vpop.f32.mrf.mxu0
    %v268 = vadd.f32 %v155, %v267
    %269 = vmatmul.f32.gmra.mxu0 %v206
    %v270 = vpop.f32.mrf.mxu0
    %v271 = vadd.f32 %v158, %v270
    %272 = vmatmul.f32.gmra.mxu0 %v209
    %v273 = vpop.f32.mrf.mxu0
    %v274 = vadd.f32 %v161, %v273
    %275 = vmatmul.f32.gmra.mxu0 %v212
    %v276 = vpop.f32.mrf.mxu0
    %v277 = vadd.f32 %v164, %v276
    %278 = vmatmul.f32.gmra.mxu0 %v215
    %v279 = vpop.f32.mrf.mxu0
    %v280 = vadd.f32 %v167, %v279
    %281 = vmatmul.f32.gmra.mxu0 %v218
    %v282 = vpop.f32.mrf.mxu0
    %v283 = vadd.f32 %v170, %v282
    %284 = vmatmul.f32.gmra.mxu0 %v221
    %v285 = vpop.f32.mrf.mxu0
    %v286 = vadd.f32 %v173, %v285
    %287 = vmatmul.f32.gmra.mxu0 %v224
    %v288 = vpop.f32.mrf.mxu0
    %v289 = vadd.f32 %v176, %v288
    %290 = vmatmul.f32.gmra.mxu0 %v227
    %v291 = vpop.f32.mrf.mxu0
    %v292 = vadd.f32 %v179, %v291
    %293 = vmatmul.f32.gmra.mxu0 %v230
    %v294 = vpop.f32.mrf.mxu0
    %v295 = vadd.f32 %v182, %v294
    %296 = vmatmul.f32.gmra.mxu0 %v233
    %v297 = vpop.f32.mrf.mxu0
    %v298 = vadd.f32 %v185, %v297
    %299 = vmatmul.f32.gmra.mxu0 %v236
    %v300 = vpop.f32.mrf.mxu0
    %v301 = vadd.f32 %v188, %v300
    %302 = vdwg.mxu0
    %v303 = vld [vmem:[%s2] sm:$0xff]
    %v304 = vld [vmem:[%s2 + $0x8] sm:$0xff]
    %v305 = vld [vmem:[%s2 + $0x10] sm:$0xff]
    %v306 = vld [vmem:[%s2 + $0x18] sm:$0xff]
    %v307 = vld [vmem:[%s2 + $0x20] sm:$0xff]
    %v308 = vld [vmem:[%s2 + $0x28] sm:$0xff]
    %v309 = vld [vmem:[%s2 + $0x30] sm:$0xff]
    %v310 = vld [vmem:[%s2 + $0x38] sm:$0xff]
    %v311 = vld [vmem:[%s2 + $0x40] sm:$0xff]
    %v312 = vld [vmem:[%s2 + $0x48] sm:$0xff]
    %v313 = vld [vmem:[%s2 + $0x50] sm:$0xff]
    %v314 = vld [vmem:[%s2 + $0x58] sm:$0xff]
    %v315 = vld [vmem:[%s2 + $0x60] sm:$0xff]
    %v316 = vld [vmem:[%s2 + $0x68] sm:$0xff]
    %v317 = vld [vmem:[%s2 + $0x70] sm:$0xff]
    %v318 = vld [vmem:[%s2 + $0x78] sm:$0xff]
    %v319 = vld [vmem:[%s5] sm:$0xff]
    %v320 = vld [vmem:[%s5 + $0x8] sm:$0xff]
    %v322 = vsel %vm76, %v303, 0
    %v325 = vsel %vm76, %v304, 0
    %v328 = vsel %vm76, %v305, 0
    %v331 = vsel %vm76, %v306, 0
    %v334 = vsel %vm76, %v307, 0
    %v337 = vsel %vm76, %v308, 0
    %v340 = vsel %vm76, %v309, 0
    %v343 = vsel %vm76, %v310, 0
    %v346 = vsel %vm76, %v311, 0
    %v349 = vsel %vm76, %v312, 0
    %v352 = vsel %vm76, %v313, 0
    %v355 = vsel %vm76, %v314, 0
    %v358 = vsel %vm76, %v315, 0
    %v361 = vsel %vm76, %v316, 0
    %v364 = vsel %vm76, %v317, 0
    %v367 = vsel %vm76, %v318, 0
    %369 = vmatpush.msra.mxu0 0.0
    %370 = vmatpush.msra.mxu0 0.0
    %371 = vmatpush.msra.mxu0 0.0
    %372 = vmatpush.msra.mxu0 0.0
    %373 = vmatpush.msra.mxu0 0.0
    %374 = vmatpush.msra.mxu0 0.0
    %375 = vmatpush.msra.mxu0 0.0
    %376 = vmatpush.msra.mxu0 0.0
    %377 = vmatpush.msra.mxu0 0.0
    %378 = vmatpush.msra.mxu0 0.0
    %379 = vmatpush.msra.mxu0 0.0
    %380 = vmatpush.msra.mxu0 0.0
    %381 = vmatpush.msra.mxu0 0.0
    %382 = vmatpush.msra.mxu0 0.0
    %383 = vmatpush.msra.mxu0 %v320
    %384 = vmatpush.msra.mxu0 %v319
    %385 = vmatmul.f32.gmra.mxu0 %v322
    %v386 = vpop.f32.mrf.mxu0
    %v387 = vadd.f32 0.0, %v386
    %388 = vmatmul.f32.gmra.mxu0 %v325
    %v389 = vpop.f32.mrf.mxu0
    %v390 = vadd.f32 0.0, %v389
    %391 = vmatmul.f32.gmra.mxu0 %v328
    %v392 = vpop.f32.mrf.mxu0
    %v393 = vadd.f32 0.0, %v392
    %394 = vmatmul.f32.gmra.mxu0 %v331
    %v395 = vpop.f32.mrf.mxu0
    %v396 = vadd.f32 0.0, %v395
    %397 = vmatmul.f32.gmra.mxu0 %v334
    %v398 = vpop.f32.mrf.mxu0
    %v399 = vadd.f32 0.0, %v398
    %400 = vmatmul.f32.gmra.mxu0 %v337
    %v401 = vpop.f32.mrf.mxu0
    %v402 = vadd.f32 0.0, %v401
    %403 = vmatmul.f32.gmra.mxu0 %v340
    %v404 = vpop.f32.mrf.mxu0
    %v405 = vadd.f32 0.0, %v404
    %406 = vmatmul.f32.gmra.mxu0 %v343
    %v407 = vpop.f32.mrf.mxu0
    %v408 = vadd.f32 0.0, %v407
    %409 = vmatmul.f32.gmra.mxu0 %v346
    %v410 = vpop.f32.mrf.mxu0
    %v411 = vadd.f32 0.0, %v410
    %412 = vmatmul.f32.gmra.mxu0 %v349
    %v413 = vpop.f32.mrf.mxu0
    %v414 = vadd.f32 0.0, %v413
    %415 = vmatmul.f32.gmra.mxu0 %v352
    %v416 = vpop.f32.mrf.mxu0
    %v417 = vadd.f32 0.0, %v416
    %418 = vmatmul.f32.gmra.mxu0 %v355
    %v419 = vpop.f32.mrf.mxu0
    %v420 = vadd.f32 0.0, %v419
    %421 = vmatmul.f32.gmra.mxu0 %v358
    %v422 = vpop.f32.mrf.mxu0
    %v423 = vadd.f32 0.0, %v422
    %424 = vmatmul.f32.gmra.mxu0 %v361
    %v425 = vpop.f32.mrf.mxu0
    %v426 = vadd.f32 0.0, %v425
    %427 = vmatmul.f32.gmra.mxu0 %v364
    %v428 = vpop.f32.mrf.mxu0
    %v429 = vadd.f32 0.0, %v428
    %430 = vmatmul.f32.gmra.mxu0 %v367
    %v431 = vpop.f32.mrf.mxu0
    %v432 = vadd.f32 0.0, %v431
    %433 = vdwg.mxu0
    %v434 = vadd.f32 %v256, %v387
    %v435 = vadd.f32 %v259, %v390
    %v436 = vadd.f32 %v262, %v393
    %v437 = vadd.f32 %v265, %v396
    %v438 = vadd.f32 %v268, %v399
    %v439 = vadd.f32 %v271, %v402
    %v440 = vadd.f32 %v274, %v405
    %v441 = vadd.f32 %v277, %v408
    %v442 = vadd.f32 %v280, %v411
    %v443 = vadd.f32 %v283, %v414
    %v444 = vadd.f32 %v286, %v417
    %v445 = vadd.f32 %v289, %v420
    %v446 = vadd.f32 %v292, %v423
    %v447 = vadd.f32 %v295, %v426
    %v448 = vadd.f32 %v298, %v429
    %v449 = vadd.f32 %v301, %v432
    %v450 = vld [vmem:[%s6] sm:$0x1]
    %v452 = vperm.slane %v450, 0
    %v454 = vadd.f32 %v434, %v452
    %v455 = vadd.f32 %v435, %v452
    %v456 = vadd.f32 %v436, %v452
    %v457 = vadd.f32 %v437, %v452
    %v458 = vadd.f32 %v438, %v452
    %v459 = vadd.f32 %v439, %v452
    %v460 = vadd.f32 %v440, %v452
    %v461 = vadd.f32 %v441, %v452
    %v462 = vadd.f32 %v442, %v452
    %v463 = vadd.f32 %v443, %v452
    %v464 = vadd.f32 %v444, %v452
    %v465 = vadd.f32 %v445, %v452
    %v466 = vadd.f32 %v446, %v452
    %v467 = vadd.f32 %v447, %v452
    %v468 = vadd.f32 %v448, %v452
    %v469 = vadd.f32 %v449, %v452
    %v470 = vmax.f32 %v454, 0.0
    %v471 = vmax.f32 %v455, 0.0
    %v472 = vmax.f32 %v456, 0.0
    %v473 = vmax.f32 %v457, 0.0
    %v474 = vmax.f32 %v458, 0.0
    %v475 = vmax.f32 %v459, 0.0
    %v476 = vmax.f32 %v460, 0.0
    %v477 = vmax.f32 %v461, 0.0
    %v478 = vmax.f32 %v462, 0.0
    %v479 = vmax.f32 %v463, 0.0
    %v480 = vmax.f32 %v464, 0.0
    %v481 = vmax.f32 %v465, 0.0
    %v482 = vmax.f32 %v466, 0.0
    %v483 = vmax.f32 %v467, 0.0
    %v484 = vmax.f32 %v468, 0.0
    %v485 = vmax.f32 %v469, 0.0
    %v486 = vld [vmem:[%s7] sm:$0xff]
    %v487 = vld [vmem:[%s7 + $0x8] sm:$0xff]
    %v488 = vld [vmem:[%s7 + $0x10] sm:$0xff]
    %v489 = vld [vmem:[%s7 + $0x18] sm:$0xff]
    %v490 = vld [vmem:[%s7 + $0x20] sm:$0xff]
    %v491 = vld [vmem:[%s7 + $0x28] sm:$0xff]
    %v492 = vld [vmem:[%s7 + $0x30] sm:$0xff]
    %v493 = vld [vmem:[%s7 + $0x38] sm:$0xff]
    %v494 = vld [vmem:[%s7 + $0x40] sm:$0xff]
    %v495 = vld [vmem:[%s7 + $0x48] sm:$0xff]
    %v496 = vld [vmem:[%s7 + $0x50] sm:$0xff]
    %v497 = vld [vmem:[%s7 + $0x58] sm:$0xff]
    %v498 = vld [vmem:[%s7 + $0x60] sm:$0xff]
    %v499 = vld [vmem:[%s7 + $0x68] sm:$0xff]
    %v500 = vld [vmem:[%s7 + $0x70] sm:$0xff]
    %v501 = vld [vmem:[%s7 + $0x78] sm:$0xff]
    %v502 = vld [vmem:[%s8] sm:$0x1]
    %v504 = vperm.slane %v502, 0
    %506 = vmatpush.msra.mxu0 %v501
    %507 = vmatpush.msra.mxu0 %v500
    %508 = vmatpush.msra.mxu0 %v499
    %509 = vmatpush.msra.mxu0 %v498
    %510 = vmatpush.msra.mxu0 %v497
    %511 = vmatpush.msra.mxu0 %v496
    %512 = vmatpush.msra.mxu0 %v495
    %513 = vmatpush.msra.mxu0 %v494
    %514 = vmatpush.msra.mxu0 %v493
    %515 = vmatpush.msra.mxu0 %v492
    %516 = vmatpush.msra.mxu0 %v491
    %517 = vmatpush.msra.mxu0 %v490
    %518 = vmatpush.msra.mxu0 %v489
    %519 = vmatpush.msra.mxu0 %v488
    %520 = vmatpush.msra.mxu0 %v487
    %521 = vmatpush.msra.mxu0 %v486
    %522 = vmatmul.f32.gmra.mxu0 %v470
    %v523 = vpop.f32.mrf.mxu0
    %v524 = vadd.f32 %v504, %v523
    %525 = vmatmul.f32.gmra.mxu0 %v471
    %v526 = vpop.f32.mrf.mxu0
    %v527 = vadd.f32 %v504, %v526
    %528 = vmatmul.f32.gmra.mxu0 %v472
    %v529 = vpop.f32.mrf.mxu0
    %v530 = vadd.f32 %v504, %v529
    %531 = vmatmul.f32.gmra.mxu0 %v473
    %v532 = vpop.f32.mrf.mxu0
    %v533 = vadd.f32 %v504, %v532
    %534 = vmatmul.f32.gmra.mxu0 %v474
    %v535 = vpop.f32.mrf.mxu0
    %v536 = vadd.f32 %v504, %v535
    %537 = vmatmul.f32.gmra.mxu0 %v475
    %v538 = vpop.f32.mrf.mxu0
    %v539 = vadd.f32 %v504, %v538
    %540 = vmatmul.f32.gmra.mxu0 %v476
    %v541 = vpop.f32.mrf.mxu0
    %v542 = vadd.f32 %v504, %v541
    %543 = vmatmul.f32.gmra.mxu0 %v477
    %v544 = vpop.f32.mrf.mxu0
    %v545 = vadd.f32 %v504, %v544
    %546 = vmatmul.f32.gmra.mxu0 %v478
    %v547 = vpop.f32.mrf.mxu0
    %v548 = vadd.f32 %v504, %v547
    %549 = vmatmul.f32.gmra.mxu0 %v479
    %v550 = vpop.f32.mrf.mxu0
    %v551 = vadd.f32 %v504, %v550
    %552 = vmatmul.f32.gmra.mxu0 %v480
    %v553 = vpop.f32.mrf.mxu0
    %v554 = vadd.f32 %v504, %v553
    %555 = vmatmul.f32.gmra.mxu0 %v481
    %v556 = vpop.f32.mrf.mxu0
    %v557 = vadd.f32 %v504, %v556
    %558 = vmatmul.f32.gmra.mxu0 %v482
    %v559 = vpop.f32.mrf.mxu0
    %v560 = vadd.f32 %v504, %v559
    %561 = vmatmul.f32.gmra.mxu0 %v483
    %v562 = vpop.f32.mrf.mxu0
    %v563 = vadd.f32 %v504, %v562
    %564 = vmatmul.f32.gmra.mxu0 %v484
    %v565 = vpop.f32.mrf.mxu0
    %v566 = vadd.f32 %v504, %v565
    %567 = vmatmul.f32.gmra.mxu0 %v485
    %v568 = vpop.f32.mrf.mxu0
    %v569 = vadd.f32 %v504, %v568
    %570 = vdwg.mxu0
    %v571 = vmax.f32 %v524, 0.0
    %v572 = vmax.f32 %v527, 0.0
    %v573 = vmax.f32 %v530, 0.0
    %v574 = vmax.f32 %v533, 0.0
    %v575 = vmax.f32 %v536, 0.0
    %v576 = vmax.f32 %v539, 0.0
    %v577 = vmax.f32 %v542, 0.0
    %v578 = vmax.f32 %v545, 0.0
    %v579 = vmax.f32 %v548, 0.0
    %v580 = vmax.f32 %v551, 0.0
    %v581 = vmax.f32 %v554, 0.0
    %v582 = vmax.f32 %v557, 0.0
    %v583 = vmax.f32 %v560, 0.0
    %v584 = vmax.f32 %v563, 0.0
    %v585 = vmax.f32 %v566, 0.0
    %v586 = vmax.f32 %v569, 0.0
    %v587 = vld [vmem:[%s9] sm:$0x1]
    %s588 = sld [smem:[#allocation2]]
    %v589 = vstv %s588
    %590 = vmatpush.xpose.msra.mxu0 %v586
    %591 = vmatpush.xpose.msra.mxu0 %v585
    %592 = vmatpush.xpose.msra.mxu0 %v584
    %593 = vmatpush.xpose.msra.mxu0 %v583
    %594 = vmatpush.xpose.msra.mxu0 %v582
    %595 = vmatpush.xpose.msra.mxu0 %v581
    %596 = vmatpush.xpose.msra.mxu0 %v580
    %597 = vmatpush.xpose.msra.mxu0 %v579
    %598 = vmatpush.xpose.msra.mxu0 %v578
    %599 = vmatpush.xpose.msra.mxu0 %v577
    %600 = vmatpush.xpose.msra.mxu0 %v576
    %601 = vmatpush.xpose.msra.mxu0 %v575
    %602 = vmatpush.xpose.msra.mxu0 %v574
    %603 = vmatpush.xpose.msra.mxu0 %v573
    %604 = vmatpush.xpose.msra.mxu0 %v572
    %605 = vmatpush.xpose.msra.mxu0 %v571
    %606 = vmatmul.f32.gmra.mxu0 %v587
    %v607 = vpop.f32.mrf.mxu0
    %v608 = vadd.f32 %v589, %v607
    %609 = vdwg.mxu0
    %v610 = vxor.u32 %v608, 2147483648
    %v611 = vmul.f32 %v610, 1.442695
    %v612 = vpow.pop %v611
    %v613 = vadd.f32 %v612, 1.0
    %v614 = vrcp.pop %v613
    %v615 = vmul.f32 %v613, %v614
    %v616 = vsub.f32 1.0, %v615
    %v617 = vmul.f32 %v614, %v616
    %v618 = vadd.f32 %v614, %v617
    %vm619 = vweird.f32 %v613
    %vm620 = vweird.f32 %v614
    %vm621 = vmor %vm619, %vm620
    %v622 = vsel %vm621, %v614, %v618
    %v623 = vand.u32 2147483647, %v613
    %vm624 = vcmp.eq.f32.partialorder %v623, 8.507059e+37
    %v625 = vand.u32 %v613, 2147483648
    %v626 = vor.u32 1.1754944e-38, %v625
    %v627 = vsel %vm624, %v626, %v622
    %v628 = vmul.f32 1.0, %v627
    %629 = vst [vmem:[#allocation3] sm:$0x1] %v628
    // Predicated region
    $region46: #{tpu_custom_call.1} parent=1 // pred_check
      _
    $region47: #{tpu_custom_call.1} parent=1 // pred_check_branch
      %631 = sbr.rel (0) target = $region49
    $region48: #{tpu_custom_call.1} parent=1 // pred_region
      %633 = vsyncadd [#allocation4], 0
      %s635 = sshll.u32 [#allocation3], 4
      %s636 = int_to_ptr.vmem [resolvable:$true] %s635
      %s637 = sshll.u32 %s11, 4
      %s638 = int_to_ptr.hbm [resolvable:$true] %s637
      %640 = dma.vmem_to_hbm [thread:$0]  %s636, 16, %s638, [#allocation4]
    $region49: #{tpu_custom_call.1} parent=1 // pred_fallthru
      _
    // Predicated region
    $region50: #{tpu_custom_call.1} parent=1 // pred_check
      _
    $region51: #{tpu_custom_call.1} parent=1 // pred_check_branch
      %642 = sbr.rel (0) target = $region53
    $region52: #{tpu_custom_call.1} parent=1 // pred_region
      %644 = dma.done [#allocation4], 16
    $region53: #{tpu_custom_call.1} parent=1 // pred_fallthru
      _
    %645 = vsyncpa [#allocation4], 1

</llo_original>
